<compile_context>
chip_gen: v7x
topology: tpu7x:2x2x1
jax: 0.10.0
libtpu: 0.0.40
codegen_flags: <defaults>
</compile_context>

<pallas_src>
import jax
import jax.numpy as jnp
from jax.experimental import pallas as pl
from jax.experimental.pallas import tpu as pltpu


def _prompt_assemble_kernel(prefix_ref, ctx_ref, suffix_ref, out_ref):
    # prefix_ref : (cls_tile, ctx_dim)            per-class SOS embedding
    # ctx_ref    : (1, n_ctx * ctx_dim)           shared learnable context (resident)
    # suffix_ref : (cls_tile, n_suffix * ctx_dim) per-class class-name + EOS embeddings
    # out_ref    : (cls_tile, n_tkn * ctx_dim)
    cls_tile = out_ref.shape[0]
    ctx_dim = prefix_ref.shape[1]
    n_ctx = ctx_ref.shape[1] // ctx_dim

    # Token 0: per-class SOS embedding (lanes [0, ctx_dim)).
    out_ref[:, :ctx_dim] = prefix_ref[...]

    # Tokens [1, 1 + n_ctx): shared context, sublane-broadcast over the class
    # tile.  One token per store keeps the live broadcast value at
    # cls_tile * ctx_dim elements (bounded in _choose_cls_tile) instead of the
    # whole cls_tile * n_ctx * ctx_dim band; static slice offsets give aligned,
    # full-width stores whenever ctx_dim % 128 == 0 (all CLIP widths).
    for t in range(n_ctx):
        out_ref[:, (1 + t) * ctx_dim:(2 + t) * ctx_dim] = jnp.broadcast_to(
            ctx_ref[:, t * ctx_dim:(t + 1) * ctx_dim], (cls_tile, ctx_dim))

    # Tokens [1 + n_ctx, n_tkn): per-class class-name + EOS embeddings.
    out_ref[:, (1 + n_ctx) * ctx_dim:] = suffix_ref[...]


def _choose_cls_tile(n_cls, n_ctx, n_suffix, ctx_dim, itemsize,
                     vmem_budget_bytes=24 << 20, min_grid_steps=2,
                     max_bcast_store_bytes=128 << 10):
    """How many classes to assemble per grid step (sublane-aligned).

    - multiple of the sublane packing (8 f32 / 16 bf16) so flattened blocks
      satisfy the (8,128) constraint and stores are never sublane-masked;
    - capped so double-buffered (prefix + suffix + out) blocks plus the
      resident ctx buffers fit the 32 MiB scoped-VMEM limit with headroom;
    - capped so the per-token broadcast-store value stays small vs the vreg file;
    - capped so the grid keeps >= min_grid_steps roughly balanced steps
      (pipeline startup; v7x megacore sharding of the "parallel" axis).
    n_cls that is not a multiple of the tile is padded by the wrapper.
    """
    n_tkn = 1 + n_ctx + n_suffix
    sub = max(8, 32 // max(itemsize, 1))          # 8 for f32, 16 for bf16

    per_class = 2 * (1 + n_suffix + n_tkn) * ctx_dim * itemsize   # dbl-buffered
    budget = max(0, vmem_budget_bytes - 2 * n_ctx * ctx_dim * itemsize)
    cap_vmem = max(1, budget // per_class)

    cap_vreg = max(1, max_bcast_store_bytes // (ctx_dim * itemsize))

    per_step = -(-n_cls // min_grid_steps)        # ceil(n_cls / min_grid_steps)

    tile = min(int(cap_vmem), int(cap_vreg), int(per_step), int(n_cls))
    tile = max(sub, (tile // sub) * sub)
    return tile


def prompt_learner_forward(token_prefix, ctx, token_suffix):
    """Pallas implementation of PromptLearner.forward (class_token_position='end').

    token_prefix : (n_cls, 1, ctx_dim)        frozen SOS embeddings
    ctx          : (n_ctx, ctx_dim)           learnable generic (non-CSC) context
    token_suffix : (n_cls, n_suffix, ctx_dim) frozen class-name + EOS embeddings
    returns      : (n_cls, 1 + n_ctx + n_suffix, ctx_dim)
    """
    n_cls, n_prefix, ctx_dim = token_prefix.shape
    assert n_prefix == 1, "token_prefix must contain exactly the SOS token"
    n_ctx = ctx.shape[0]
    assert ctx.shape[1] == ctx_dim and token_suffix.shape[2] == ctx_dim
    n_suffix = token_suffix.shape[1]
    assert n_suffix >= 1, "token_suffix must contain at least the EOS token"
    n_tkn = 1 + n_ctx + n_suffix
    dtype = token_prefix.dtype
    itemsize = jnp.dtype(dtype).itemsize

    cls_tile = _choose_cls_tile(n_cls, n_ctx, n_suffix, ctx_dim, itemsize)
    n_cls_pad = (n_cls + cls_tile - 1) // cls_tile * cls_tile
    grid = (n_cls_pad // cls_tile,)

    # Free row-major views: flatten (token, ctx_dim) onto the lane axis.
    prefix_flat = token_prefix.reshape(n_cls, ctx_dim)
    suffix_flat = token_suffix.reshape(n_cls, n_suffix * ctx_dim)
    # Hoisted dtype cast (tiny array) — kernel body does no casts.
    ctx_flat = ctx.astype(dtype).reshape(1, n_ctx * ctx_dim)

    if n_cls_pad != n_cls:
        pad = n_cls_pad - n_cls
        prefix_flat = jnp.pad(prefix_flat, ((0, pad), (0, 0)))
        suffix_flat = jnp.pad(suffix_flat, ((0, pad), (0, 0)))

    out_flat = pl.pallas_call(
        _prompt_assemble_kernel,
        out_shape=jax.ShapeDtypeStruct((n_cls_pad, n_tkn * ctx_dim), dtype),
        grid_spec=pltpu.PrefetchScalarGridSpec(
            num_scalar_prefetch=0,
            grid=grid,
            in_specs=[
                # per-class-tile SOS slab (full embedding width on lanes)
                pl.BlockSpec((cls_tile, ctx_dim), lambda c: (c, 0)),
                # shared context: constant index_map -> resident in VMEM
                pl.BlockSpec((1, n_ctx * ctx_dim), lambda c: (0, 0)),
                # per-class-tile suffix slab (bulk of the bytes)
                pl.BlockSpec((cls_tile, n_suffix * ctx_dim), lambda c: (c, 0)),
            ],
            out_specs=pl.BlockSpec((cls_tile, n_tkn * ctx_dim),
                                   lambda c: (c, 0)),
        ),
        compiler_params=pltpu.CompilerParams(
            # class axis is fully independent -> shard across TensorCores (v7x)
            dimension_semantics=("parallel",),
            # 32 MiB scoped VMEM is safe on v5e/v6e/v7x and lets the class
            # tile grow well past the v5e 16 MiB default.
            vmem_limit_bytes=32 << 20,
        ),
    )(prefix_flat, ctx_flat, suffix_flat)

    if n_cls_pad != n_cls:
        out_flat = out_flat[:n_cls]
    return out_flat.reshape(n_cls, n_tkn, ctx_dim)


def _reference(token_prefix, ctx, token_suffix):
    n_cls = token_prefix.shape[0]
    ctx_b = jnp.broadcast_to(ctx[None, :, :], (n_cls,) + ctx.shape)
    return jnp.concatenate(
        [token_prefix, ctx_b.astype(token_prefix.dtype), token_suffix], axis=1)


if __name__ == "__main__":
    # Small synthetic shapes consistent with the module:
    #   n_cls classes, n_ctx learnable context tokens, ctx_dim embedding dim,
    #   total tokenized length n_tkn (77 in CLIP; kept small here).
    n_cls = 48      # len(classnames)
    n_ctx = 8       # cfg.TRAINER.COOP.N_CTX
    ctx_dim = 128   # clip_model.ln_final.weight.shape[0]
    n_tkn = 32      # tokenized prompt length
    n_suffix = n_tkn - 1 - n_ctx
    dtype = jnp.float32

    key = jax.random.PRNGKey(0)
    k_ctx, k_emb = jax.random.split(key)

    # Deterministic parameter init: nn.init.normal_(ctx_vectors, std=0.02)
    ctx = 0.02 * jax.random.normal(k_ctx, (n_ctx, ctx_dim), dtype=dtype)

    # Synthetic frozen token embeddings of the tokenized prompts.
    # TODO(synk): real CLIP tokenizer + token_embedding lookup not reproduced;
    # deterministic random embeddings stand in for the frozen buffers.
    embedding = jax.random.normal(k_emb, (n_cls, n_tkn, ctx_dim), dtype=dtype)
    token_prefix = embedding[:, :1, :]           # SOS
    token_suffix = embedding[:, 1 + n_ctx:, :]   # class-name tokens + EOS

    prompts = prompt_learner_forward(token_prefix, ctx, token_suffix)
    prompts = jax.block_until_ready(prompts)

    expected = _reference(token_prefix, ctx, token_suffix)
    assert prompts.shape == (n_cls, n_tkn, ctx_dim), prompts.shape
    assert jnp.allclose(prompts, expected), "mismatch vs reference"

    # Exercise the padded path (class count not a multiple of the tile).
    n_cls2 = 13
    emb2 = jax.random.normal(jax.random.PRNGKey(1),
                             (n_cls2, n_tkn, ctx_dim), dtype=dtype)
    pre2, suf2 = emb2[:, :1, :], emb2[:, 1 + n_ctx:, :]
    prompts2 = jax.block_until_ready(prompt_learner_forward(pre2, ctx, suf2))
    assert prompts2.shape == (n_cls2, n_tkn, ctx_dim), prompts2.shape
    assert jnp.allclose(prompts2, _reference(pre2, ctx, suf2)), "mismatch (pad path)"

    print("KERNEL_OK")
</pallas_src>

<mosaic_0001>
module attributes {stable_mosaic.version = 11 : i64} {
  func.func @_prompt_assemble_kernel(%arg0: i32, %arg1: memref<24x128xf32, #tpu.memory_space<vmem>>, %arg2: memref<1x1024xf32, #tpu.memory_space<vmem>>, %arg3: memref<24x2944xf32, #tpu.memory_space<vmem>>, %arg4: memref<24x4096xf32, #tpu.memory_space<vmem>>) attributes {dimension_semantics = [#tpu.dimension_semantics<parallel>], iteration_bounds = array<i64: 2>, scalar_prefetch = 0 : i64, scratch_operands = 0 : i64, tpu.core_type = #tpu.core_type<tc>, window_params = [{transform_indices = @transform_0, window_bounds = array<i64: 24, 128>}, {pipeline_mode = #tpu.pipeline_mode<synchronous>, transform_indices = @transform_1, window_bounds = array<i64: 1, 1024>}, {transform_indices = @transform_2, window_bounds = array<i64: 24, 2944>}, {transform_indices = @transform_3, window_bounds = array<i64: 24, 4096>}]} {
    %c0 = arith.constant 0 : index
    %c0_0 = arith.constant 0 : index
    %0 = vector.load %arg1[%c0, %c0_0] : memref<24x128xf32, #tpu.memory_space<vmem>>, vector<24x128xf32>
    %c0_1 = arith.constant 0 : index
    %c0_2 = arith.constant 0 : index
    %1 = vector.load %arg4[%c0_1, %c0_2] : memref<24x4096xf32, #tpu.memory_space<vmem>>, vector<24x128xf32>
    tpu.vector_store %arg4[%c0_1, %c0_2], %0 {strides = array<i32>} : memref<24x4096xf32, #tpu.memory_space<vmem>>, vector<24x128xf32>,
    %c0_3 = arith.constant 0 : index
    %c0_4 = arith.constant 0 : index
    %2 = vector.load %arg2[%c0_3, %c0_4] : memref<1x1024xf32, #tpu.memory_space<vmem>>, vector<1x128xf32>
    %3 = vector.shape_cast %2 : vector<1x128xf32> to vector<1x128xf32>
    %4 = vector.broadcast %3 : vector<1x128xf32> to vector<24x128xf32>
    %c0_5 = arith.constant 0 : index
    %c128 = arith.constant 128 : index
    %5 = vector.load %arg4[%c0_5, %c128] : memref<24x4096xf32, #tpu.memory_space<vmem>>, vector<24x128xf32>
    tpu.vector_store %arg4[%c0_5, %c128], %4 {strides = array<i32>} : memref<24x4096xf32, #tpu.memory_space<vmem>>, vector<24x128xf32>,
    %c0_6 = arith.constant 0 : index
    %c128_7 = arith.constant 128 : index
    %6 = vector.load %arg2[%c0_6, %c128_7] : memref<1x1024xf32, #tpu.memory_space<vmem>>, vector<1x128xf32>
    %7 = vector.shape_cast %6 : vector<1x128xf32> to vector<1x128xf32>
    %8 = vector.broadcast %7 : vector<1x128xf32> to vector<24x128xf32>
    %c0_8 = arith.constant 0 : index
    %c256 = arith.constant 256 : index
    %9 = vector.load %arg4[%c0_8, %c256] : memref<24x4096xf32, #tpu.memory_space<vmem>>, vector<24x128xf32>
    tpu.vector_store %arg4[%c0_8, %c256], %8 {strides = array<i32>} : memref<24x4096xf32, #tpu.memory_space<vmem>>, vector<24x128xf32>,
    %c0_9 = arith.constant 0 : index
    %c256_10 = arith.constant 256 : index
    %10 = vector.load %arg2[%c0_9, %c256_10] : memref<1x1024xf32, #tpu.memory_space<vmem>>, vector<1x128xf32>
    %11 = vector.shape_cast %10 : vector<1x128xf32> to vector<1x128xf32>
    %12 = vector.broadcast %11 : vector<1x128xf32> to vector<24x128xf32>
    %c0_11 = arith.constant 0 : index
    %c384 = arith.constant 384 : index
    %13 = vector.load %arg4[%c0_11, %c384] : memref<24x4096xf32, #tpu.memory_space<vmem>>, vector<24x128xf32>
    tpu.vector_store %arg4[%c0_11, %c384], %12 {strides = array<i32>} : memref<24x4096xf32, #tpu.memory_space<vmem>>, vector<24x128xf32>,
    %c0_12 = arith.constant 0 : index
    %c384_13 = arith.constant 384 : index
    %14 = vector.load %arg2[%c0_12, %c384_13] : memref<1x1024xf32, #tpu.memory_space<vmem>>, vector<1x128xf32>
    %15 = vector.shape_cast %14 : vector<1x128xf32> to vector<1x128xf32>
    %16 = vector.broadcast %15 : vector<1x128xf32> to vector<24x128xf32>
    %c0_14 = arith.constant 0 : index
    %c512 = arith.constant 512 : index
    %17 = vector.load %arg4[%c0_14, %c512] : memref<24x4096xf32, #tpu.memory_space<vmem>>, vector<24x128xf32>
    tpu.vector_store %arg4[%c0_14, %c512], %16 {strides = array<i32>} : memref<24x4096xf32, #tpu.memory_space<vmem>>, vector<24x128xf32>,
    %c0_15 = arith.constant 0 : index
    %c512_16 = arith.constant 512 : index
    %18 = vector.load %arg2[%c0_15, %c512_16] : memref<1x1024xf32, #tpu.memory_space<vmem>>, vector<1x128xf32>
    %19 = vector.shape_cast %18 : vector<1x128xf32> to vector<1x128xf32>
    %20 = vector.broadcast %19 : vector<1x128xf32> to vector<24x128xf32>
    %c0_17 = arith.constant 0 : index
    %c640 = arith.constant 640 : index
    %21 = vector.load %arg4[%c0_17, %c640] : memref<24x4096xf32, #tpu.memory_space<vmem>>, vector<24x128xf32>
    tpu.vector_store %arg4[%c0_17, %c640], %20 {strides = array<i32>} : memref<24x4096xf32, #tpu.memory_space<vmem>>, vector<24x128xf32>,
    %c0_18 = arith.constant 0 : index
    %c640_19 = arith.constant 640 : index
    %22 = vector.load %arg2[%c0_18, %c640_19] : memref<1x1024xf32, #tpu.memory_space<vmem>>, vector<1x128xf32>
    %23 = vector.shape_cast %22 : vector<1x128xf32> to vector<1x128xf32>
    %24 = vector.broadcast %23 : vector<1x128xf32> to vector<24x128xf32>
    %c0_20 = arith.constant 0 : index
    %c768 = arith.constant 768 : index
    %25 = vector.load %arg4[%c0_20, %c768] : memref<24x4096xf32, #tpu.memory_space<vmem>>, vector<24x128xf32>
    tpu.vector_store %arg4[%c0_20, %c768], %24 {strides = array<i32>} : memref<24x4096xf32, #tpu.memory_space<vmem>>, vector<24x128xf32>,
    %c0_21 = arith.constant 0 : index
    %c768_22 = arith.constant 768 : index
    %26 = vector.load %arg2[%c0_21, %c768_22] : memref<1x1024xf32, #tpu.memory_space<vmem>>, vector<1x128xf32>
    %27 = vector.shape_cast %26 : vector<1x128xf32> to vector<1x128xf32>
    %28 = vector.broadcast %27 : vector<1x128xf32> to vector<24x128xf32>
    %c0_23 = arith.constant 0 : index
    %c896 = arith.constant 896 : index
    %29 = vector.load %arg4[%c0_23, %c896] : memref<24x4096xf32, #tpu.memory_space<vmem>>, vector<24x128xf32>
    tpu.vector_store %arg4[%c0_23, %c896], %28 {strides = array<i32>} : memref<24x4096xf32, #tpu.memory_space<vmem>>, vector<24x128xf32>,
    %c0_24 = arith.constant 0 : index
    %c896_25 = arith.constant 896 : index
    %30 = vector.load %arg2[%c0_24, %c896_25] : memref<1x1024xf32, #tpu.memory_space<vmem>>, vector<1x128xf32>
    %31 = vector.shape_cast %30 : vector<1x128xf32> to vector<1x128xf32>
    %32 = vector.broadcast %31 : vector<1x128xf32> to vector<24x128xf32>
    %c0_26 = arith.constant 0 : index
    %c1024 = arith.constant 1024 : index
    %33 = vector.load %arg4[%c0_26, %c1024] : memref<24x4096xf32, #tpu.memory_space<vmem>>, vector<24x128xf32>
    tpu.vector_store %arg4[%c0_26, %c1024], %32 {strides = array<i32>} : memref<24x4096xf32, #tpu.memory_space<vmem>>, vector<24x128xf32>,
    %c0_27 = arith.constant 0 : index
    %c0_28 = arith.constant 0 : index
    %34 = vector.load %arg3[%c0_27, %c0_28] : memref<24x2944xf32, #tpu.memory_space<vmem>>, vector<24x2944xf32>
    %c0_29 = arith.constant 0 : index
    %c1152 = arith.constant 1152 : index
    %35 = vector.load %arg4[%c0_29, %c1152] : memref<24x4096xf32, #tpu.memory_space<vmem>>, vector<24x2944xf32>
    tpu.vector_store %arg4[%c0_29, %c1152], %34 {strides = array<i32>} : memref<24x4096xf32, #tpu.memory_space<vmem>>, vector<24x2944xf32>,
    return
  }
  func.func @transform_0(%arg0: i32) -> (i32, i32) {
    %c0_i32 = arith.constant 0 : i32
    %c0_i32_0 = arith.constant 0 : i32
    return %arg0, %c0_i32 : i32, i32
  }
  func.func @transform_1(%arg0: i32) -> (i32, i32) {
    %c0_i32 = arith.constant 0 : i32
    %c0_i32_0 = arith.constant 0 : i32
    %c0_i32_1 = arith.constant 0 : i32
    return %c0_i32, %c0_i32_0 : i32, i32
  }
  func.func @transform_2(%arg0: i32) -> (i32, i32) {
    %c0_i32 = arith.constant 0 : i32
    %c0_i32_0 = arith.constant 0 : i32
    return %arg0, %c0_i32 : i32, i32
  }
  func.func @transform_3(%arg0: i32) -> (i32, i32) {
    %c0_i32 = arith.constant 0 : i32
    %c0_i32_0 = arith.constant 0 : i32
    return %arg0, %c0_i32 : i32, i32
  }
}

</mosaic_0001>

<llo_original>
// kernel: tpu_custom_call.1
$region0: #{tpu_custom_call.1}
  #allocation0 [shape = 'u32[]', space=smem, size = 0x4, offset = 0x4, fixed_abs, tag = 'smem constant byte address 0x4 - core index']
  #allocation1 [shape = 'u32[144,128]{1,0:T(1,128)}', space=vmem, size = 0x12000, scoped, tag = 'internal scratch']
  %s0 = inlined_call_operand.hbm [shape: f32[48,128], index: 0, kind: input, shape index: {}]
  %s1 = inlined_call_operand.hbm [shape: f32[1,1024], index: 1, kind: input, shape index: {}]
  %s2 = inlined_call_operand.hbm [shape: f32[48,2944], index: 2, kind: input, shape index: {}]
  %s3 = inlined_call_operand.hbm [shape: f32[48,4096], index: 3, kind: output, shape index: {}]
  %s4 = sld [smem:[#allocation0]]
  $region57: #{tpu_custom_call.1} parent=0
    _
  %s6 = ssub.s32 1, %s4
  %s7 = scalar_select 0, %s6, %s4
  $region1: #{tpu_custom_call.1} parent=0
    #allocation2 [shape = 'u8[24576]{0}', space=vmem, size = 0x6000, scoped, tag = 'input window, operand 0']
    #allocation3 [shape = 's32[2]{0}', space=sflag, size = 0x8, scoped, tag = 'scoped memory for tpu_custom_call.1']
    #allocation4 [shape = 's32[2]{0}', space=sflag, size = 0x8, scoped, tag = 'scoped memory for tpu_custom_call.1']
    #allocation5 [shape = 'u8[4096]{0}', space=vmem, size = 0x1000, scoped, tag = 'input window, operand 1, single buffered']
    #allocation6 [shape = 's32[1]{0}', space=sflag, size = 0x4, scoped, tag = 'scoped memory for tpu_custom_call.1']
    #allocation7 [shape = 'u8[565248]{0}', space=vmem, size = 0x8a000, scoped, tag = 'input window, operand 2']
    #allocation8 [shape = 'u8[786432]{0}', space=vmem, size = 0xc0000, scoped, tag = 'output window, operand 0']
    %8 = vsyncpa [#allocation3], 0
    %s9 = scalar_lea.sflag [#allocation3], 1
    %10 = vsyncpa %s9, 0
    %11 = vsyncpa [#allocation6], 0
    %12 = vsyncpa [#allocation4], 0
    %s13 = scalar_lea.sflag [#allocation4], 1
    %14 = vsyncpa %s13, 0
    loop: start=0, step=1, limit=4
    $region2: #{tpu_custom_call.1} parent=1 // loop_pre_header
      _
    $region3: #{tpu_custom_call.1} parent=1 // loop_header
      %s16 = sphi 0, %s20
      %p17 = scmp.ge.s32.totalorder %s16, 4
      %s26 = sphi 0, %s28
      %s29 = sphi 0, %s26
      %s30 = sphi 0, %s29
      %s46 = sphi 0, %s30
      %s50 = sphi 0, %s50
      %s52 = sphi 0, %s50
      %s53 = sphi 0, %s52
      %s67 = sphi 0, %s53
      %s73 = sphi 0, %s75
      %s76 = sphi 0, %s73
      %s77 = sphi 0, %s76
      %s93 = sphi 0, %s77
      %s99 = sphi 0, %s101
      %s102 = sphi 0, %s99
      %s103 = sphi 0, %s102
      %s119 = sphi 0, %s103
    $region4: #{tpu_custom_call.1} parent=1 // loop_header_branch
      %19 = sbr.rel (%p17) target = $region8
    $region5: #{tpu_custom_call.1} parent=1 // loop_body
      %s21 = ssub.s32 %s16, 1
      %s22 = ssub.s32 %s16, 2
      %s23 = sadd.s32 %s16, 1
      %s24 = ssub.s32 %s16, %s23
      %p25 = scmp.eq.s32.totalorder %s24, 0
      %s27 = sadd.s32 %s26, 1
      %s28 = scalar_select %p25, %s26, %s27
      %p31 = pneg %p25
      %p32 = scmp.eq.s32.totalorder %s16, 1
      %p33 = por %p31, %p32
      %p34 = scmp.ne.s32.totalorder %s26, %s29
      %p35 = scmp.eq.s32.totalorder %s16, 0
      %p36 = por %p34, %p35
      %p37 = scmp.ne.s32.totalorder %s26, %s29
      %p38 = scmp.eq.s32.totalorder %s21, 1
      %p39 = por %p37, %p38
      %p40 = scmp.ne.s32.totalorder %s29, %s30
      %p41 = scmp.eq.s32.totalorder %s21, 0
      %p42 = por %p40, %p41
      %p43 = scmp.ne.s32.totalorder %s29, %s30
      %p44 = scmp.eq.s32.totalorder %s22, 1
      %p45 = por %p43, %p44
      %p47 = scmp.ne.s32.totalorder %s30, %s46
      %p48 = scmp.eq.s32.totalorder %s22, 0
      %p49 = por %p47, %p48
      %s51 = sadd.s32 %s50, 1
      %p54 = scmp.eq.s32.totalorder %s16, 1
      %p55 = scmp.ne.s32.totalorder %s50, %s52
      %p56 = scmp.eq.s32.totalorder %s16, 0
      %p57 = por %p55, %p56
      %p58 = scmp.ne.s32.totalorder %s50, %s52
      %p59 = scmp.eq.s32.totalorder %s21, 1
      %p60 = por %p58, %p59
      %p61 = scmp.ne.s32.totalorder %s52, %s53
      %p62 = scmp.eq.s32.totalorder %s21, 0
      %p63 = por %p61, %p62
      %p64 = scmp.ne.s32.totalorder %s52, %s53
      %p65 = scmp.eq.s32.totalorder %s22, 1
      %p66 = por %p64, %p65
      %p68 = scmp.ne.s32.totalorder %s53, %s67
      %p69 = scmp.eq.s32.totalorder %s22, 0
      %p70 = por %p68, %p69
      %s71 = ssub.s32 %s16, %s23
      %p72 = scmp.eq.s32.totalorder %s71, 0
      %s74 = sadd.s32 %s73, 1
      %s75 = scalar_select %p72, %s73, %s74
      %p78 = pneg %p72
      %p79 = scmp.eq.s32.totalorder %s16, 1
      %p80 = por %p78, %p79
      %p81 = scmp.ne.s32.totalorder %s73, %s76
      %p82 = scmp.eq.s32.totalorder %s16, 0
      %p83 = por %p81, %p82
      %p84 = scmp.ne.s32.totalorder %s73, %s76
      %p85 = scmp.eq.s32.totalorder %s21, 1
      %p86 = por %p84, %p85
      %p87 = scmp.ne.s32.totalorder %s76, %s77
      %p88 = scmp.eq.s32.totalorder %s21, 0
      %p89 = por %p87, %p88
      %p90 = scmp.ne.s32.totalorder %s76, %s77
      %p91 = scmp.eq.s32.totalorder %s22, 1
      %p92 = por %p90, %p91
      %p94 = scmp.ne.s32.totalorder %s77, %s93
      %p95 = scmp.eq.s32.totalorder %s22, 0
      %p96 = por %p94, %p95
      %s97 = ssub.s32 %s16, %s23
      %p98 = scmp.eq.s32.totalorder %s97, 0
      %s100 = sadd.s32 %s99, 1
      %s101 = scalar_select %p98, %s99, %s100
      %p104 = pneg %p98
      %p105 = scmp.eq.s32.totalorder %s16, 1
      %p106 = por %p104, %p105
      %p107 = scmp.ne.s32.totalorder %s99, %s102
      %p108 = scmp.eq.s32.totalorder %s16, 0
      %p109 = por %p107, %p108
      %p110 = scmp.ne.s32.totalorder %s99, %s102
      %p111 = scmp.eq.s32.totalorder %s21, 1
      %p112 = por %p110, %p111
      %p113 = scmp.ne.s32.totalorder %s102, %s103
      %p114 = scmp.eq.s32.totalorder %s21, 0
      %p115 = por %p113, %p114
      %p116 = scmp.ne.s32.totalorder %s102, %s103
      %p117 = scmp.eq.s32.totalorder %s22, 1
      %p118 = por %p116, %p117
      %p120 = scmp.ne.s32.totalorder %s103, %s119
      %p121 = scmp.eq.s32.totalorder %s22, 0
      %p122 = por %p120, %p121
      %p123 = scmp.le.s32.totalorder 1, %s16
      %p124 = scmp.lt.s32.totalorder %s16, 3
      %p125 = pnand %p123, %p124
      %p126 = pneg %p125
      // Predicated region
      $region9: #{tpu_custom_call.1} parent=5 // pred_check
        _
      $region10: #{tpu_custom_call.1} parent=5 // pred_check_branch
        %128 = sbr.rel (%p125) target = $region12
      $region11: #{tpu_custom_call.1} parent=5 // pred_region
        %s129 = ssub.s32 %s16, 1
        // Predicated region
        $region13: #{tpu_custom_call.1} parent=11 // pred_check
          %p130 = pneg %p63
        $region14: #{tpu_custom_call.1} parent=11 // pred_check_branch
          %132 = sbr.rel (%p130) target = $region16
        $region15: #{tpu_custom_call.1} parent=11 // pred_region
          %s134 = ssub.s32 128, 128
          %135 = vsyncadd [#allocation6], %s134
          %s137 = sshll.u32 [#allocation5], 4
          %s138 = int_to_ptr.vmem [resolvable:$true] %s137
          %140 = dma.hbm_to_vmem [thread:$0]  %s1, 128, %s138, [#allocation6]
        $region16: #{tpu_custom_call.1} parent=11 // pred_fallthru
          _
      $region12: #{tpu_custom_call.1} parent=5 // pred_fallthru
        _
      %p141 = scmp.lt.s32.totalorder %s16, 2
      // Predicated region
      $region17: #{tpu_custom_call.1} parent=5 // pred_check
        %p142 = pneg %p141
      $region18: #{tpu_custom_call.1} parent=5 // pred_check_branch
        %144 = sbr.rel (%p142) target = $region20
      $region19: #{tpu_custom_call.1} parent=5 // pred_region
        // Predicated region
        $region21: #{tpu_custom_call.1} parent=19 // pred_check
          %p145 = pneg %p36
        $region22: #{tpu_custom_call.1} parent=19 // pred_check_branch
          %147 = sbr.rel (%p145) target = $region24
        $region23: #{tpu_custom_call.1} parent=19 // pred_region
          %s148 = sand.u32 %s16, 1
          %s149 = scalar_lea.sflag [#allocation3], %s148
          %s150 = sand.u32 %s26, 1
          %s151 = smul.addr %s150, 24
          %s152 = scalar_lea.vmem [#allocation2], %s151
          %s153 = smul.u32 3, %s16
          %s155 = ssub.s32 384, 384
          %156 = vsyncadd %s149, %s155
          %s157 = smul.addr %s153, 128
          %s158 = scalar_lea.hbm %s0, %s157
          %s159 = sshll.u32 %s152, 4
          %s160 = int_to_ptr.vmem [resolvable:$true] %s159
          %165 = dma.hbm_to_vmem [thread:$0]  %s158, 384, %s160, %s149, 128, 128, 8
        $region24: #{tpu_custom_call.1} parent=19 // pred_fallthru
          _
        // Predicated region
        $region25: #{tpu_custom_call.1} parent=19 // pred_check
          %p166 = pneg %p83
        $region26: #{tpu_custom_call.1} parent=19 // pred_check_branch
          %168 = sbr.rel (%p166) target = $region28
        $region27: #{tpu_custom_call.1} parent=19 // pred_region
          %s169 = sand.u32 %s16, 1
          %s170 = scalar_lea.sflag [#allocation3], %s169
          %s171 = sand.u32 %s73, 1
          %s172 = smul.addr %s171, 552
          %s173 = scalar_lea.vmem [#allocation7], %s172
          %s174 = smul.u32 3, %s16
          %s176 = ssub.s32 8832, 8832
          %177 = vsyncadd %s170, %s176
          %s178 = smul.addr %s174, 23
          %s179 = smul.addr %s178, 128
          %s180 = scalar_lea.hbm %s2, %s179
          %s181 = sshll.u32 %s173, 4
          %s182 = int_to_ptr.vmem [resolvable:$true] %s181
          %187 = dma.hbm_to_vmem [thread:$0]  %s180, 8832, %s182, %s170, 2944, 2944, 184
        $region28: #{tpu_custom_call.1} parent=19 // pred_fallthru
          _
      $region20: #{tpu_custom_call.1} parent=5 // pred_fallthru
        _
      %p188 = scmp.le.s32.totalorder 1, %s16
      %p189 = scmp.lt.s32.totalorder %s16, 3
      %p190 = pnand %p188, %p189
      %p191 = pneg %p190
      // Predicated region
      $region29: #{tpu_custom_call.1} parent=5 // pred_check
        _
      $region30: #{tpu_custom_call.1} parent=5 // pred_check_branch
        %193 = sbr.rel (%p190) target = $region32
      $region31: #{tpu_custom_call.1} parent=5 // pred_region
        %s194 = ssub.s32 %s16, 1
        %s195 = sand.u32 %s21, 1
        %s196 = scalar_lea.sflag [#allocation3], %s195
        %s197 = sand.u32 %s29, 1
        %s198 = smul.addr %s197, 24
        %s199 = scalar_lea.vmem [#allocation2], %s198
        // Predicated region
        $region33: #{tpu_custom_call.1} parent=31 // pred_check
          %p200 = pneg %p42
        $region34: #{tpu_custom_call.1} parent=31 // pred_check_branch
          %202 = sbr.rel (%p200) target = $region36
        $region35: #{tpu_custom_call.1} parent=31 // pred_region
          %203 = dma.done %s196, 384
        $region36: #{tpu_custom_call.1} parent=31 // pred_fallthru
          _
        // Predicated region
        $region37: #{tpu_custom_call.1} parent=31 // pred_check
          %p204 = pneg %p63
        $region38: #{tpu_custom_call.1} parent=31 // pred_check_branch
          %206 = sbr.rel (%p204) target = $region40
        $region39: #{tpu_custom_call.1} parent=31 // pred_region
          %207 = dma.done [#allocation6], 128
        $region40: #{tpu_custom_call.1} parent=31 // pred_fallthru
          _
        %s208 = sand.u32 %s21, 1
        %s209 = scalar_lea.sflag [#allocation3], %s208
        %s210 = sand.u32 %s76, 1
        %s211 = smul.addr %s210, 552
        %s212 = scalar_lea.vmem [#allocation7], %s211
        // Predicated region
        $region41: #{tpu_custom_call.1} parent=31 // pred_check
          %p213 = pneg %p89
        $region42: #{tpu_custom_call.1} parent=31 // pred_check_branch
          %215 = sbr.rel (%p213) target = $region44
        $region43: #{tpu_custom_call.1} parent=31 // pred_region
          %216 = dma.done %s209, 8832
        $region44: #{tpu_custom_call.1} parent=31 // pred_fallthru
          _
        %s217 = sand.u32 %s21, 1
        %s218 = scalar_lea.sflag [#allocation3], %s217
        %s219 = sand.u32 %s29, 1
        %s220 = smul.addr %s219, 24
        %s221 = scalar_lea.vmem [#allocation2], %s220
        %p222 = pneg %p42
        %p223 = pneg %p39
        %p224 = pneg %p63
        %p225 = pneg %p60
        %s226 = sand.u32 %s21, 1
        %s227 = scalar_lea.sflag [#allocation3], %s226
        %s228 = sand.u32 %s76, 1
        %s229 = smul.addr %s228, 552
        %s230 = scalar_lea.vmem [#allocation7], %s229
        %p231 = pneg %p89
        %p232 = pneg %p86
        %p233 = pneg %p115
        %p234 = pneg %p112
        %s235 = sand.u32 %s102, 1
        %s236 = scalar_lea.sflag [#allocation4], %s235
        %s237 = sand.u32 %s102, 1
        %s238 = smul.addr %s237, 768
        %s239 = scalar_lea.vmem [#allocation8], %s238
        %s240 = smul.u32 3, %s21
        %s241 = smul.u32 3, %s21
        %s242 = smul.u32 3, %s21
        %v243 = vld [vmem:[%s199] sm:$0xff]
        %v244 = vld [vmem:[%s199 + $0x8] sm:$0xff]
        %v245 = vld [vmem:[%s199 + $0x10] sm:$0xff]
        %246 = vst [vmem:[%s239] sm:$0xff] %v243
        %247 = vst [vmem:[%s239 + $0x100] sm:$0xff] %v244
        %248 = vst [vmem:[%s239 + $0x200] sm:$0xff] %v245
        %v249 = vld [vmem:[#allocation5] sm:$0x1]
        %v251 = vlaneseq
        %v252 = vshrl.u32 %v251, 7
        %v253 = vsub.s32 0, %v252
        %v254 = vrot.slane %v249, %v253
        %256 = vst [vmem:[%s239 + $0x8] sm:$0xff] %v254
        %257 = vst [vmem:[%s239 + $0x108] sm:$0xff] %v254
        %258 = vst [vmem:[%s239 + $0x208] sm:$0xff] %v254
        %v259 = vld [vmem:[#allocation5 + $0x1] sm:$0x1]
        %v261 = vlaneseq
        %v262 = vshrl.u32 %v261, 7
        %v263 = vsub.s32 0, %v262
        %v264 = vrot.slane %v259, %v263
        %266 = vst [vmem:[%s239 + $0x10] sm:$0xff] %v264
        %267 = vst [vmem:[%s239 + $0x110] sm:$0xff] %v264
        %268 = vst [vmem:[%s239 + $0x210] sm:$0xff] %v264
        %v269 = vld [vmem:[#allocation5 + $0x2] sm:$0x1]
        %v271 = vlaneseq
        %v272 = vshrl.u32 %v271, 7
        %v273 = vsub.s32 0, %v272
        %v274 = vrot.slane %v269, %v273
        %276 = vst [vmem:[%s239 + $0x18] sm:$0xff] %v274
        %277 = vst [vmem:[%s239 + $0x118] sm:$0xff] %v274
        %278 = vst [vmem:[%s239 + $0x218] sm:$0xff] %v274
        %v279 = vld [vmem:[#allocation5 + $0x3] sm:$0x1]
        %v281 = vlaneseq
        %v282 = vshrl.u32 %v281, 7
        %v283 = vsub.s32 0, %v282
        %v284 = vrot.slane %v279, %v283
        %286 = vst [vmem:[%s239 + $0x20] sm:$0xff] %v284
        %287 = vst [vmem:[%s239 + $0x120] sm:$0xff] %v284
        %288 = vst [vmem:[%s239 + $0x220] sm:$0xff] %v284
        %v289 = vld [vmem:[#allocation5 + $0x4] sm:$0x1]
        %v291 = vlaneseq
        %v292 = vshrl.u32 %v291, 7
        %v293 = vsub.s32 0, %v292
        %v294 = vrot.slane %v289, %v293
        %296 = vst [vmem:[%s239 + $0x28] sm:$0xff] %v294
        %297 = vst [vmem:[%s239 + $0x128] sm:$0xff] %v294
        %298 = vst [vmem:[%s239 + $0x228] sm:$0xff] %v294
        %v299 = vld [vmem:[#allocation5 + $0x5] sm:$0x1]
        %v301 = vlaneseq
        %v302 = vshrl.u32 %v301, 7
        %v303 = vsub.s32 0, %v302
        %v304 = vrot.slane %v299, %v303
        %306 = vst [vmem:[%s239 + $0x30] sm:$0xff] %v304
        %307 = vst [vmem:[%s239 + $0x130] sm:$0xff] %v304
        %308 = vst [vmem:[%s239 + $0x230] sm:$0xff] %v304
        %v309 = vld [vmem:[#allocation5 + $0x6] sm:$0x1]
        %v311 = vlaneseq
        %v312 = vshrl.u32 %v311, 7
        %v313 = vsub.s32 0, %v312
        %v314 = vrot.slane %v309, %v313
        %316 = vst [vmem:[%s239 + $0x38] sm:$0xff] %v314
        %317 = vst [vmem:[%s239 + $0x138] sm:$0xff] %v314
        %318 = vst [vmem:[%s239 + $0x238] sm:$0xff] %v314
        %v319 = vld [vmem:[#allocation5 + $0x7] sm:$0x1]
        %v321 = vlaneseq
        %v322 = vshrl.u32 %v321, 7
        %v323 = vsub.s32 0, %v322
        %v324 = vrot.slane %v319, %v323
        %326 = vst [vmem:[%s239 + $0x40] sm:$0xff] %v324
        %327 = vst [vmem:[%s239 + $0x140] sm:$0xff] %v324
        %328 = vst [vmem:[%s239 + $0x240] sm:$0xff] %v324
        %v329 = vld [vmem:[%s212] sm:$0xff]
        %v330 = vld [vmem:[%s212 + $0x8] sm:$0xff]
        %v331 = vld [vmem:[%s212 + $0x10] sm:$0xff]
        %v332 = vld [vmem:[%s212 + $0x18] sm:$0xff]
        %v333 = vld [vmem:[%s212 + $0x20] sm:$0xff]
        %v334 = vld [vmem:[%s212 + $0x28] sm:$0xff]
        %v335 = vld [vmem:[%s212 + $0x30] sm:$0xff]
        %v336 = vld [vmem:[%s212 + $0x38] sm:$0xff]
        %v337 = vld [vmem:[%s212 + $0x40] sm:$0xff]
        %v338 = vld [vmem:[%s212 + $0x48] sm:$0xff]
        %v339 = vld [vmem:[%s212 + $0x50] sm:$0xff]
        %v340 = vld [vmem:[%s212 + $0x58] sm:$0xff]
        %v341 = vld [vmem:[%s212 + $0x60] sm:$0xff]
        %v342 = vld [vmem:[%s212 + $0x68] sm:$0xff]
        %v343 = vld [vmem:[%s212 + $0x70] sm:$0xff]
        %v344 = vld [vmem:[%s212 + $0x78] sm:$0xff]
        %v345 = vld [vmem:[%s212 + $0x80] sm:$0xff]
        %v346 = vld [vmem:[%s212 + $0x88] sm:$0xff]
        %v347 = vld [vmem:[%s212 + $0x90] sm:$0xff]
        %v348 = vld [vmem:[%s212 + $0x98] sm:$0xff]
        %v349 = vld [vmem:[%s212 + $0xa0] sm:$0xff]
        %v350 = vld [vmem:[%s212 + $0xa8] sm:$0xff]
        %v351 = vld [vmem:[%s212 + $0xb0] sm:$0xff]
        %v352 = vld [vmem:[%s212 + $0xb8] sm:$0xff]
        %v353 = vld [vmem:[%s212 + $0xc0] sm:$0xff]
        %v354 = vld [vmem:[%s212 + $0xc8] sm:$0xff]
        %v355 = vld [vmem:[%s212 + $0xd0] sm:$0xff]
        %v356 = vld [vmem:[%s212 + $0xd8] sm:$0xff]
        %v357 = vld [vmem:[%s212 + $0xe0] sm:$0xff]
        %v358 = vld [vmem:[%s212 + $0xe8] sm:$0xff]
        %v359 = vld [vmem:[%s212 + $0xf0] sm:$0xff]
        %v360 = vld [vmem:[%s212 + $0xf8] sm:$0xff]
        %v361 = vld [vmem:[%s212 + $0x100] sm:$0xff]
        %v362 = vld [vmem:[%s212 + $0x108] sm:$0xff]
        %v363 = vld [vmem:[%s212 + $0x110] sm:$0xff]
        %v364 = vld [vmem:[%s212 + $0x118] sm:$0xff]
        %v365 = vld [vmem:[%s212 + $0x120] sm:$0xff]
        %v366 = vld [vmem:[%s212 + $0x128] sm:$0xff]
        %v367 = vld [vmem:[%s212 + $0x130] sm:$0xff]
        %v368 = vld [vmem:[%s212 + $0x138] sm:$0xff]
        %v369 = vld [vmem:[%s212 + $0x140] sm:$0xff]
        %v370 = vld [vmem:[%s212 + $0x148] sm:$0xff]
        %v371 = vld [vmem:[%s212 + $0x150] sm:$0xff]
        %v372 = vld [vmem:[%s212 + $0x158] sm:$0xff]
        %v373 = vld [vmem:[%s212 + $0x160] sm:$0xff]
        %v374 = vld [vmem:[%s212 + $0x168] sm:$0xff]
        %v375 = vld [vmem:[%s212 + $0x170] sm:$0xff]
        %v376 = vld [vmem:[%s212 + $0x178] sm:$0xff]
        %v377 = vld [vmem:[%s212 + $0x180] sm:$0xff]
        %v378 = vld [vmem:[%s212 + $0x188] sm:$0xff]
        %v379 = vld [vmem:[%s212 + $0x190] sm:$0xff]
        %v380 = vld [vmem:[%s212 + $0x198] sm:$0xff]
        %v381 = vld [vmem:[%s212 + $0x1a0] sm:$0xff]
        %v382 = vld [vmem:[%s212 + $0x1a8] sm:$0xff]
        %v383 = vld [vmem:[%s212 + $0x1b0] sm:$0xff]
        %v384 = vld [vmem:[%s212 + $0x1b8] sm:$0xff]
        %v385 = vld [vmem:[%s212 + $0x1c0] sm:$0xff]
        %v386 = vld [vmem:[%s212 + $0x1c8] sm:$0xff]
        %v387 = vld [vmem:[%s212 + $0x1d0] sm:$0xff]
        %v388 = vld [vmem:[%s212 + $0x1d8] sm:$0xff]
        %v389 = vld [vmem:[%s212 + $0x1e0] sm:$0xff]
        %v390 = vld [vmem:[%s212 + $0x1e8] sm:$0xff]
        %v391 = vld [vmem:[%s212 + $0x1f0] sm:$0xff]
        %v392 = vld [vmem:[%s212 + $0x1f8] sm:$0xff]
        %v393 = vld [vmem:[%s212 + $0x200] sm:$0xff]
        %v394 = vld [vmem:[%s212 + $0x208] sm:$0xff]
        %v395 = vld [vmem:[%s212 + $0x210] sm:$0xff]
        %v396 = vld [vmem:[%s212 + $0x218] sm:$0xff]
        %v397 = vld [vmem:[%s212 + $0x220] sm:$0xff]
        %398 = vst [vmem:[%s239 + $0x48] sm:$0xff] %v329
        %399 = vst [vmem:[%s239 + $0x50] sm:$0xff] %v330
        %400 = vst [vmem:[%s239 + $0x58] sm:$0xff] %v331
        %401 = vst [vmem:[%s239 + $0x60] sm:$0xff] %v332
        %402 = vst [vmem:[%s239 + $0x68] sm:$0xff] %v333
        %403 = vst [vmem:[%s239 + $0x70] sm:$0xff] %v334
        %404 = vst [vmem:[%s239 + $0x78] sm:$0xff] %v335
        %405 = vst [vmem:[%s239 + $0x80] sm:$0xff] %v336
        %406 = vst [vmem:[%s239 + $0x88] sm:$0xff] %v337
        %407 = vst [vmem:[%s239 + $0x90] sm:$0xff] %v338
        %408 = vst [vmem:[%s239 + $0x98] sm:$0xff] %v339
        %409 = vst [vmem:[%s239 + $0xa0] sm:$0xff] %v340
        %410 = vst [vmem:[%s239 + $0xa8] sm:$0xff] %v341
        %411 = vst [vmem:[%s239 + $0xb0] sm:$0xff] %v342
        %412 = vst [vmem:[%s239 + $0xb8] sm:$0xff] %v343
        %413 = vst [vmem:[%s239 + $0xc0] sm:$0xff] %v344
        %414 = vst [vmem:[%s239 + $0xc8] sm:$0xff] %v345
        %415 = vst [vmem:[%s239 + $0xd0] sm:$0xff] %v346
        %416 = vst [vmem:[%s239 + $0xd8] sm:$0xff] %v347
        %417 = vst [vmem:[%s239 + $0xe0] sm:$0xff] %v348
        %418 = vst [vmem:[%s239 + $0xe8] sm:$0xff] %v349
        %419 = vst [vmem:[%s239 + $0xf0] sm:$0xff] %v350
        %420 = vst [vmem:[%s239 + $0xf8] sm:$0xff] %v351
        %421 = vst [vmem:[%s239 + $0x148] sm:$0xff] %v352
        %422 = vst [vmem:[%s239 + $0x150] sm:$0xff] %v353
        %423 = vst [vmem:[%s239 + $0x158] sm:$0xff] %v354
        %424 = vst [vmem:[%s239 + $0x160] sm:$0xff] %v355
        %425 = vst [vmem:[%s239 + $0x168] sm:$0xff] %v356
        %426 = vst [vmem:[%s239 + $0x170] sm:$0xff] %v357
        %427 = vst [vmem:[%s239 + $0x178] sm:$0xff] %v358
        %428 = vst [vmem:[%s239 + $0x180] sm:$0xff] %v359
        %429 = vst [vmem:[%s239 + $0x188] sm:$0xff] %v360
        %430 = vst [vmem:[%s239 + $0x190] sm:$0xff] %v361
        %431 = vst [vmem:[%s239 + $0x198] sm:$0xff] %v362
        %432 = vst [vmem:[%s239 + $0x1a0] sm:$0xff] %v363
        %433 = vst [vmem:[%s239 + $0x1a8] sm:$0xff] %v364
        %434 = vst [vmem:[%s239 + $0x1b0] sm:$0xff] %v365
        %435 = vst [vmem:[%s239 + $0x1b8] sm:$0xff] %v366
        %436 = vst [vmem:[%s239 + $0x1c0] sm:$0xff] %v367
        %437 = vst [vmem:[%s239 + $0x1c8] sm:$0xff] %v368
        %438 = vst [vmem:[%s239 + $0x1d0] sm:$0xff] %v369
        %439 = vst [vmem:[%s239 + $0x1d8] sm:$0xff] %v370
        %440 = vst [vmem:[%s239 + $0x1e0] sm:$0xff] %v371
        %441 = vst [vmem:[%s239 + $0x1e8] sm:$0xff] %v372
        %442 = vst [vmem:[%s239 + $0x1f0] sm:$0xff] %v373
        %443 = vst [vmem:[%s239 + $0x1f8] sm:$0xff] %v374
        %444 = vst [vmem:[%s239 + $0x248] sm:$0xff] %v375
        %445 = vst [vmem:[%s239 + $0x250] sm:$0xff] %v376
        %446 = vst [vmem:[%s239 + $0x258] sm:$0xff] %v377
        %447 = vst [vmem:[%s239 + $0x260] sm:$0xff] %v378
        %448 = vst [vmem:[%s239 + $0x268] sm:$0xff] %v379
        %449 = vst [vmem:[%s239 + $0x270] sm:$0xff] %v380
        %450 = vst [vmem:[%s239 + $0x278] sm:$0xff] %v381
        %451 = vst [vmem:[%s239 + $0x280] sm:$0xff] %v382
        %452 = vst [vmem:[%s239 + $0x288] sm:$0xff] %v383
        %453 = vst [vmem:[%s239 + $0x290] sm:$0xff] %v384
        %454 = vst [vmem:[%s239 + $0x298] sm:$0xff] %v385
        %455 = vst [vmem:[%s239 + $0x2a0] sm:$0xff] %v386
        %456 = vst [vmem:[%s239 + $0x2a8] sm:$0xff] %v387
        %457 = vst [vmem:[%s239 + $0x2b0] sm:$0xff] %v388
        %458 = vst [vmem:[%s239 + $0x2b8] sm:$0xff] %v389
        %459 = vst [vmem:[%s239 + $0x2c0] sm:$0xff] %v390
        %460 = vst [vmem:[%s239 + $0x2c8] sm:$0xff] %v391
        %461 = vst [vmem:[%s239 + $0x2d0] sm:$0xff] %v392
        %462 = vst [vmem:[%s239 + $0x2d8] sm:$0xff] %v393
        %463 = vst [vmem:[%s239 + $0x2e0] sm:$0xff] %v394
        %464 = vst [vmem:[%s239 + $0x2e8] sm:$0xff] %v395
        %465 = vst [vmem:[%s239 + $0x2f0] sm:$0xff] %v396
        %466 = vst [vmem:[%s239 + $0x2f8] sm:$0xff] %v397
        %s467 = sand.u32 %s102, 1
        %s468 = scalar_lea.sflag [#allocation4], %s467
        %s469 = sand.u32 %s102, 1
        %s470 = smul.addr %s469, 768
        %s471 = scalar_lea.vmem [#allocation8], %s470
        // Predicated region
        $region45: #{tpu_custom_call.1} parent=31 // pred_check
          %p472 = pneg %p112
        $region46: #{tpu_custom_call.1} parent=31 // pred_check_branch
          %474 = sbr.rel (%p472) target = $region48
        $region47: #{tpu_custom_call.1} parent=31 // pred_region
          %s475 = smul.u32 3, %s21
          %s477 = ssub.s32 12288, 12288
          %478 = vsyncadd %s468, %s477
          %s479 = smul.addr %s475, 32
          %s480 = smul.addr %s479, 128
          %s481 = scalar_lea.hbm %s3, %s480
          %s482 = sshll.u32 %s471, 4
          %s483 = int_to_ptr.vmem [resolvable:$true] %s482
          %488 = dma.vmem_to_hbm [thread:$0]  %s483, 12288, %s481, %s468, 4096, 4096, 256
        $region48: #{tpu_custom_call.1} parent=31 // pred_fallthru
          _
      $region32: #{tpu_custom_call.1} parent=5 // pred_fallthru
        _
      %p489 = scmp.le.s32.totalorder 2, %s16
      // Predicated region
      $region49: #{tpu_custom_call.1} parent=5 // pred_check
        %p490 = pneg %p489
      $region50: #{tpu_custom_call.1} parent=5 // pred_check_branch
        %492 = sbr.rel (%p490) target = $region52
      $region51: #{tpu_custom_call.1} parent=5 // pred_region
        %s493 = ssub.s32 %s16, 2
        // Predicated region
        $region53: #{tpu_custom_call.1} parent=51 // pred_check
          %p494 = pneg %p118
        $region54: #{tpu_custom_call.1} parent=51 // pred_check_branch
          %496 = sbr.rel (%p494) target = $region56
        $region55: #{tpu_custom_call.1} parent=51 // pred_region
          %s497 = sand.u32 %s103, 1
          %s498 = scalar_lea.sflag [#allocation4], %s497
          %s499 = sand.u32 %s103, 1
          %s500 = smul.addr %s499, 768
          %s501 = scalar_lea.vmem [#allocation8], %s500
          %502 = dma.done %s498, 12288
        $region56: #{tpu_custom_call.1} parent=51 // pred_fallthru
          _
      $region52: #{tpu_custom_call.1} parent=5 // pred_fallthru
        _
    $region6: #{tpu_custom_call.1} parent=1 // loop_footer
      %s20 = sadd.s32 1, %s16
    $region7: #{tpu_custom_call.1} parent=1 // loop_footer_branch
      %15 = sbr.rel target = $region3
    $region8: #{tpu_custom_call.1} parent=1 // loop_exit
      _
    %503 = vsyncpa [#allocation3], 1
    %s504 = scalar_lea.sflag [#allocation3], 1
    %505 = vsyncpa %s504, 1
    %506 = vsyncpa [#allocation6], 1
    %507 = vsyncpa [#allocation4], 1
    %s508 = scalar_lea.sflag [#allocation4], 1
    %509 = vsyncpa %s508, 1

</llo_original>
